<compile_context>
chip_gen: v6e
topology: v6e:2x2x1
jax: 0.10.0
libtpu: 0.0.40
codegen_flags: <defaults>
</compile_context>

<pallas_src>
import jax
import jax.numpy as jnp
from jax.experimental import pallas as pl
from jax.experimental.pallas import tpu as pltpu


def _mish_fast(x):
    # mish(x) = x * tanh(softplus(x)).  With t = e^x:
    #   tanh(log1p(t)) = (t^2 + 2t) / (t^2 + 2t + 2)
    # Keep PyTorch's softplus threshold-20 passthrough to avoid overflow.
    # (pl.reciprocal(u + 2, approx=True) would push the divide to the EUP but
    #  risks the 1e-4 tolerance; keep the exact divide.)
    t = jnp.exp(jnp.minimum(x, 20.0))
    u = t * (t + 2.0)
    return jnp.where(x > 20.0, x, x * (u / (u + 2.0)))


def _resblock_kernel(x_ref, w1_ref, b1_ref, t3_ref, b2_ref, o_ref):
    # Lane-folded layout (W and C folded into the lane axis):
    #   x_ref  : (Nb, H, W*C)        input slab (Nb images per grid step)
    #   w1_ref : (W*C, W*Ch)         block-diagonal 1x1 weight, BN1 scale folded
    #   b1_ref : (1, W*Ch)           folded BN1 bias (tiled over W)
    #   t3_ref : (3*W*Ch, W*C)       stacked banded 3x3 weight, BN2 scale folded
    #   b2_ref : (1, W*C)            folded BN2 bias (tiled over W)
    #   o_ref  : (Nb, H, W*C)        output slab
    Nb, H, WC = x_ref.shape
    WCh = w1_ref.shape[1]
    M = Nb * H

    x2d = x_ref[...].reshape(M, WC)                                   # (M, W*C)

    # --- 1x1 conv (+BN1) + Mish: one K = W*C matmul, bias add, mish ---
    z1 = jnp.dot(x2d, w1_ref[...], preferred_element_type=jnp.float32) + b1_ref[...]
    y1 = _mish_fast(z1)                                               # (M, W*Ch)

    # --- build [y1(h-1) | y1(h) | y1(h+1)] entirely in registers ---
    zrow = jnp.zeros((1, WCh), jnp.float32)
    y1p = jnp.concatenate([zrow, y1, zrow], axis=0)                   # (M+2, W*Ch)
    y1_prev = y1p[:M, :]          # row h -> y1[h-1], zero at global row 0
    y1_next = y1p[2:, :]          # row h -> y1[h+1], zero at global row M-1
    if Nb > 1:                    # zero halo rows at interior image boundaries
        rid = jax.lax.broadcasted_iota(jnp.int32, (Nb, H, WCh), 1).reshape(M, WCh)
        y1_prev = jnp.where(rid == 0, 0.0, y1_prev)
        y1_next = jnp.where(rid == H - 1, 0.0, y1_next)
    lhs = jnp.concatenate([y1_prev, y1, y1_next], axis=1)             # (M, 3*W*Ch)

    # --- 3x3 conv (+BN2): ONE fused K = 3*W*Ch matmul + bias ---
    z2 = jnp.dot(lhs, t3_ref[...], preferred_element_type=jnp.float32) + b2_ref[...]

    # --- Mish + residual add ---
    o_ref[...] = (x2d + _mish_fast(z2)).reshape(Nb, H, WC)


def _pick_images_per_block(N, H, target_rows=256):
    """Images per grid step: grow M = Nb*H toward target_rows, but keep >= 2
    parallel grid steps whenever N >= 2 (both v7x TensorCores busy)."""
    best = 1
    for nb in range(1, N + 1):
        if N % nb or nb * H > target_rows or (N >= 2 and N // nb < 2):
            continue
        best = nb
    return best


def resblock_forward_slab(x_slab, params):
    """x_slab: (N, H, W*C) lane-folded activations (channels innermost)."""
    w1f, b1, t3f, b2 = params
    N, H, WC = x_slab.shape
    WCh = w1f.shape[1]
    Nb = _pick_images_per_block(N, H)

    return pl.pallas_call(
        _resblock_kernel,
        out_shape=jax.ShapeDtypeStruct((N, H, WC), jnp.float32),
        grid=(N // Nb,),
        in_specs=[
            pl.BlockSpec((Nb, H, WC), lambda n: (n, 0, 0)),
            pl.BlockSpec((WC, WCh), lambda n: (0, 0)),
            pl.BlockSpec((1, WCh), lambda n: (0, 0)),
            pl.BlockSpec((3 * WCh, WC), lambda n: (0, 0)),
            pl.BlockSpec((1, WC), lambda n: (0, 0)),
        ],
        out_specs=pl.BlockSpec((Nb, H, WC), lambda n: (n, 0, 0)),
        compiler_params=pltpu.CompilerParams(dimension_semantics=("parallel",)),
    )(x_slab, w1f, b1, t3f, b2)


def resblock_forward(x_nchw, params):
    # NCHW -> (N, H, W*C) lane-dense slab.  Kept in the wrapper only to match
    # the PyTorch NCHW interface; a full network would relayout once.
    N, C, H, W = x_nchw.shape
    x = jnp.transpose(x_nchw, (0, 2, 3, 1)).astype(jnp.float32).reshape(N, H, W * C)
    out = resblock_forward_slab(x, params)
    return jnp.transpose(out.reshape(N, H, W, C), (0, 3, 1, 2))       # -> NCHW


# ---------------- deterministic parameter setup ----------------

def init_params(key, channels, H, W, hidden_channels=None, eps=1e-5):
    if hidden_channels is None:
        hidden_channels = channels
    C, Ch = channels, hidden_channels
    ks = jax.random.split(key, 10)
    # BasicConv #1: Conv2d(C, Ch, 1, bias=False) + BN(Ch)
    w1_t = 0.2 * jax.random.normal(ks[0], (Ch, C, 1, 1), jnp.float32)
    g1 = 1.0 + 0.1 * jax.random.normal(ks[1], (Ch,), jnp.float32)
    be1 = 0.1 * jax.random.normal(ks[2], (Ch,), jnp.float32)
    m1 = 0.1 * jax.random.normal(ks[3], (Ch,), jnp.float32)
    v1 = jax.random.uniform(ks[4], (Ch,), jnp.float32, minval=0.5, maxval=1.5)
    # BasicConv #2: Conv2d(Ch, C, 3, bias=False) + BN(C)
    w3_t = 0.1 * jax.random.normal(ks[5], (C, Ch, 3, 3), jnp.float32)
    g2 = 1.0 + 0.1 * jax.random.normal(ks[6], (C,), jnp.float32)
    be2 = 0.1 * jax.random.normal(ks[7], (C,), jnp.float32)
    m2 = 0.1 * jax.random.normal(ks[8], (C,), jnp.float32)
    v2 = jax.random.uniform(ks[9], (C,), jnp.float32, minval=0.5, maxval=1.5)

    # Fold BN (inference) into scale/bias; fold the SCALES into the weights.
    inv1 = g1 / jnp.sqrt(v1 + eps)
    inv2 = g2 / jnp.sqrt(v2 + eps)
    s1 = jnp.tile(inv1, W)                                            # (W*Ch,)
    s2 = jnp.tile(inv2, W)                                            # (W*C,)
    b1 = jnp.tile(be1 - m1 * inv1, W).reshape(1, W * Ch)
    b2 = jnp.tile(be2 - m2 * inv2, W).reshape(1, W * C)

    # 1x1 conv as a block-diagonal (W*C, W*Ch) matmul weight, BN1 scale folded.
    w1 = jnp.transpose(w1_t[:, :, 0, 0], (1, 0))                      # (C, Ch)
    w1f = jnp.kron(jnp.eye(W, dtype=jnp.float32), w1) * s1[None, :]

    # 3x3 conv as one stacked banded block-Toeplitz (3*W*Ch, W*C) matmul weight
    # (row block per ky, BN2 scale folded).  Block (wi, wo) of T[ky] = K[ky, kx]
    # with kx = wi - wo + 1 (zero elsewhere => width zero-padding built in).
    w3 = jnp.transpose(w3_t, (2, 3, 1, 0))                            # (3, 3, Ch, C)
    t_rows = []
    for ky in range(3):
        t = jnp.zeros((W * Ch, W * C), jnp.float32)
        for kx in range(3):
            t = t + jnp.kron(jnp.eye(W, k=1 - kx, dtype=jnp.float32), w3[ky, kx])
        t_rows.append(t * s2[None, :])
    t3f = jnp.concatenate(t_rows, axis=0)                             # (3*W*Ch, W*C)

    raw = (w1_t, g1, be1, m1, v1, w3_t, g2, be2, m2, v2)
    return (w1f, b1, t3f, b2), raw


# ---------------- pure-JAX reference ----------------

def reference(x, raw, eps=1e-5):
    # TODO(synk): BatchNorm is evaluated in inference mode (running stats);
    # PyTorch train-mode batch statistics are not modeled.
    w1_t, g1, be1, m1, v1, w3_t, g2, be2, m2, v2 = raw

    def bn(y, g, b, m, v):
        inv = (g / jnp.sqrt(v + eps))[None, :, None, None]
        return y * inv + (b - m * g / jnp.sqrt(v + eps))[None, :, None, None]

    def mish(z):
        sp = jnp.where(z > 20.0, z, jnp.log1p(jnp.exp(jnp.minimum(z, 20.0))))
        return z * jnp.tanh(sp)

    dn = ('NCHW', 'OIHW', 'NCHW')
    y = jax.lax.conv_general_dilated(x, w1_t, (1, 1), 'SAME', dimension_numbers=dn)
    y = mish(bn(y, g1, be1, m1, v1))
    y = jax.lax.conv_general_dilated(y, w3_t, (1, 1), 'SAME', dimension_numbers=dn)
    y = mish(bn(y, g2, be2, m2, v2))
    return x + y


if __name__ == "__main__":
    key = jax.random.PRNGKey(0)
    kx, kp = jax.random.split(key)

    N, C, H, W = 2, 8, 16, 16          # W*C = 128 -> lane-dense slabs
    x = jax.random.normal(kx, (N, C, H, W), jnp.float32)
    params, raw = init_params(kp, channels=C, H=H, W=W)

    out = jax.block_until_ready(resblock_forward(x, params))
    ref = reference(x, raw)

    assert out.shape == (N, C, H, W)
    err = jnp.max(jnp.abs(out - ref))
    assert jnp.allclose(out, ref, atol=1e-4, rtol=1e-4), f"max abs err {err}"

    print("KERNEL_OK")
</pallas_src>

<mosaic_0001>
module attributes {stable_mosaic.version = 11 : i64} {
  func.func @_resblock_kernel(%arg0: i32, %arg1: memref<1x16x128xf32, #tpu.memory_space<vmem>>, %arg2: memref<128x128xf32, #tpu.memory_space<vmem>>, %arg3: memref<1x128xf32, #tpu.memory_space<vmem>>, %arg4: memref<384x128xf32, #tpu.memory_space<vmem>>, %arg5: memref<1x128xf32, #tpu.memory_space<vmem>>, %arg6: memref<1x16x128xf32, #tpu.memory_space<vmem>>) attributes {dimension_semantics = [#tpu.dimension_semantics<parallel>], iteration_bounds = array<i64: 2>, scalar_prefetch = 0 : i64, scratch_operands = 0 : i64, tpu.core_type = #tpu.core_type<tc>, window_params = [{transform_indices = @transform_0, window_bounds = array<i64: 1, 16, 128>}, {pipeline_mode = #tpu.pipeline_mode<synchronous>, transform_indices = @transform_1, window_bounds = array<i64: 128, 128>}, {pipeline_mode = #tpu.pipeline_mode<synchronous>, transform_indices = @transform_2, window_bounds = array<i64: 1, 128>}, {pipeline_mode = #tpu.pipeline_mode<synchronous>, transform_indices = @transform_3, window_bounds = array<i64: 384, 128>}, {pipeline_mode = #tpu.pipeline_mode<synchronous>, transform_indices = @transform_4, window_bounds = array<i64: 1, 128>}, {transform_indices = @transform_5, window_bounds = array<i64: 1, 16, 128>}]} {
    %c0 = arith.constant 0 : index
    %c0_0 = arith.constant 0 : index
    %c0_1 = arith.constant 0 : index
    %0 = vector.load %arg1[%c0, %c0_0, %c0_1] : memref<1x16x128xf32, #tpu.memory_space<vmem>>, vector<1x16x128xf32>
    %1 = vector.shape_cast %0 : vector<1x16x128xf32> to vector<16x128xf32>
    %c0_2 = arith.constant 0 : index
    %c0_3 = arith.constant 0 : index
    %2 = vector.load %arg2[%c0_2, %c0_3] : memref<128x128xf32, #tpu.memory_space<vmem>>, vector<128x128xf32>
    %cst = arith.constant dense<0.000000e+00> : vector<16x128xf32>
    %3 = tpu.matmul %1, %2, %cst {dimension_numbers = #tpu.dot_dimension_numbers<[1], [0], [0], [1], [0, 0, 1, 1], [], []>} : vector<16x128xf32>, vector<128x128xf32>, vector<16x128xf32> -> vector<16x128xf32>
    %c0_4 = arith.constant 0 : index
    %c0_5 = arith.constant 0 : index
    %4 = vector.load %arg3[%c0_4, %c0_5] : memref<1x128xf32, #tpu.memory_space<vmem>>, vector<1x128xf32>
    %5 = vector.broadcast %4 : vector<1x128xf32> to vector<16x128xf32>
    %6 = arith.addf %3, %5 : vector<16x128xf32>
    %cst_6 = arith.constant 2.000000e+01 : f32
    %7 = vector.broadcast %cst_6 : f32 to vector<16x128xf32>
    %8 = arith.minimumf %6, %7 : vector<16x128xf32>
    %9 = math.exp %8 : vector<16x128xf32>
    %cst_7 = arith.constant 2.000000e+00 : f32
    %10 = vector.broadcast %cst_7 : f32 to vector<16x128xf32>
    %11 = arith.addf %9, %10 : vector<16x128xf32>
    %12 = arith.mulf %9, %11 : vector<16x128xf32>
    %cst_8 = arith.constant 2.000000e+01 : f32
    %13 = vector.broadcast %cst_8 : f32 to vector<16x128xf32>
    %14 = arith.cmpf ogt, %6, %13 : vector<16x128xf32>
    %cst_9 = arith.constant 2.000000e+00 : f32
    %15 = vector.broadcast %cst_9 : f32 to vector<16x128xf32>
    %16 = arith.addf %12, %15 : vector<16x128xf32>
    %17 = arith.divf %12, %16 : vector<16x128xf32>
    %18 = arith.mulf %6, %17 : vector<16x128xf32>
    %19 = arith.select %14, %6, %18 : vector<16x128xi1>, vector<16x128xf32>
    %cst_10 = arith.constant 0.000000e+00 : f32
    %20 = vector.broadcast %cst_10 : f32 to vector<1x128xf32>
    %21 = tpu.concatenate %20, %19, %20 in 0 : vector<1x128xf32>, vector<16x128xf32>, vector<1x128xf32> -> vector<18x128xf32>
    %22 = vector.extract_strided_slice %21 {offsets = [0, 0], sizes = [16, 128], strides = [1, 1]} : vector<18x128xf32> to vector<16x128xf32>
    %23 = vector.extract_strided_slice %21 {offsets = [2, 0], sizes = [16, 128], strides = [1, 1]} : vector<18x128xf32> to vector<16x128xf32>
    %24 = tpu.concatenate %22, %19, %23 in 1 : vector<16x128xf32>, vector<16x128xf32>, vector<16x128xf32> -> vector<16x384xf32>
    %c0_11 = arith.constant 0 : index
    %c0_12 = arith.constant 0 : index
    %25 = vector.load %arg4[%c0_11, %c0_12] : memref<384x128xf32, #tpu.memory_space<vmem>>, vector<384x128xf32>
    %cst_13 = arith.constant dense<0.000000e+00> : vector<16x128xf32>
    %26 = tpu.matmul %24, %25, %cst_13 {dimension_numbers = #tpu.dot_dimension_numbers<[1], [0], [0], [1], [0, 0, 1, 1], [], []>} : vector<16x384xf32>, vector<384x128xf32>, vector<16x128xf32> -> vector<16x128xf32>
    %c0_14 = arith.constant 0 : index
    %c0_15 = arith.constant 0 : index
    %27 = vector.load %arg5[%c0_14, %c0_15] : memref<1x128xf32, #tpu.memory_space<vmem>>, vector<1x128xf32>
    %28 = vector.broadcast %27 : vector<1x128xf32> to vector<16x128xf32>
    %29 = arith.addf %26, %28 : vector<16x128xf32>
    %cst_16 = arith.constant 2.000000e+01 : f32
    %30 = vector.broadcast %cst_16 : f32 to vector<16x128xf32>
    %31 = arith.minimumf %29, %30 : vector<16x128xf32>
    %32 = math.exp %31 : vector<16x128xf32>
    %cst_17 = arith.constant 2.000000e+00 : f32
    %33 = vector.broadcast %cst_17 : f32 to vector<16x128xf32>
    %34 = arith.addf %32, %33 : vector<16x128xf32>
    %35 = arith.mulf %32, %34 : vector<16x128xf32>
    %cst_18 = arith.constant 2.000000e+01 : f32
    %36 = vector.broadcast %cst_18 : f32 to vector<16x128xf32>
    %37 = arith.cmpf ogt, %29, %36 : vector<16x128xf32>
    %cst_19 = arith.constant 2.000000e+00 : f32
    %38 = vector.broadcast %cst_19 : f32 to vector<16x128xf32>
    %39 = arith.addf %35, %38 : vector<16x128xf32>
    %40 = arith.divf %35, %39 : vector<16x128xf32>
    %41 = arith.mulf %29, %40 : vector<16x128xf32>
    %42 = arith.select %37, %29, %41 : vector<16x128xi1>, vector<16x128xf32>
    %43 = arith.addf %1, %42 : vector<16x128xf32>
    %44 = vector.shape_cast %43 : vector<16x128xf32> to vector<1x16x128xf32>
    %c0_20 = arith.constant 0 : index
    %c0_21 = arith.constant 0 : index
    %c0_22 = arith.constant 0 : index
    %45 = vector.load %arg6[%c0_20, %c0_21, %c0_22] : memref<1x16x128xf32, #tpu.memory_space<vmem>>, vector<1x16x128xf32>
    tpu.vector_store %arg6[%c0_20, %c0_21, %c0_22], %44 {strides = array<i32>} : memref<1x16x128xf32, #tpu.memory_space<vmem>>, vector<1x16x128xf32>,
    return
  }
  func.func @transform_0(%arg0: i32) -> (i32, i32, i32) {
    %c0_i32 = arith.constant 0 : i32
    %c0_i32_0 = arith.constant 0 : i32
    %c0_i32_1 = arith.constant 0 : i32
    return %arg0, %c0_i32, %c0_i32_0 : i32, i32, i32
  }
  func.func @transform_1(%arg0: i32) -> (i32, i32) {
    %c0_i32 = arith.constant 0 : i32
    %c0_i32_0 = arith.constant 0 : i32
    %c0_i32_1 = arith.constant 0 : i32
    return %c0_i32, %c0_i32_0 : i32, i32
  }
  func.func @transform_2(%arg0: i32) -> (i32, i32) {
    %c0_i32 = arith.constant 0 : i32
    %c0_i32_0 = arith.constant 0 : i32
    %c0_i32_1 = arith.constant 0 : i32
    return %c0_i32, %c0_i32_0 : i32, i32
  }
  func.func @transform_3(%arg0: i32) -> (i32, i32) {
    %c0_i32 = arith.constant 0 : i32
    %c0_i32_0 = arith.constant 0 : i32
    %c0_i32_1 = arith.constant 0 : i32
    return %c0_i32, %c0_i32_0 : i32, i32
  }
  func.func @transform_4(%arg0: i32) -> (i32, i32) {
    %c0_i32 = arith.constant 0 : i32
    %c0_i32_0 = arith.constant 0 : i32
    %c0_i32_1 = arith.constant 0 : i32
    return %c0_i32, %c0_i32_0 : i32, i32
  }
  func.func @transform_5(%arg0: i32) -> (i32, i32, i32) {
    %c0_i32 = arith.constant 0 : i32
    %c0_i32_0 = arith.constant 0 : i32
    %c0_i32_1 = arith.constant 0 : i32
    return %arg0, %c0_i32, %c0_i32_0 : i32, i32, i32
  }
}

</mosaic_0001>

<llo_original>
// kernel: tpu_custom_call.1
$region0: #{tpu_custom_call.1}
  #allocation0 [shape = 'u32[]', space=smem, size = 0x4, offset = 0x4, fixed_abs, tag = 'smem constant byte address 0x4 - core index']
  #allocation1 [shape = 'u32[144,128]{1,0:T(1,128)}', space=vmem, size = 0x12000, scoped, tag = 'internal scratch']
  %s0 = inlined_call_operand.hbm [shape: f32[2,16,128], index: 0, kind: input, shape index: {}]
  %s1 = inlined_call_operand.hbm [shape: f32[128,128], index: 1, kind: input, shape index: {}]
  %s2 = inlined_call_operand.vmem [shape: f32[1,128], index: 2, kind: input, shape index: {}]
  %s3 = inlined_call_operand.hbm [shape: f32[384,128], index: 3, kind: input, shape index: {}]
  %s4 = inlined_call_operand.vmem [shape: f32[1,128], index: 4, kind: input, shape index: {}]
  %s5 = inlined_call_operand.hbm [shape: f32[2,16,128], index: 5, kind: output, shape index: {}]
  %s6 = sld [smem:[#allocation0]]
  $region65: #{tpu_custom_call.1} parent=0
    _
  %s8 = ssub.s32 1, %s6
  %s9 = scalar_select 0, %s8, %s6
  $region1: #{tpu_custom_call.1} parent=0
    #allocation2 [shape = 'u8[16384]{0}', space=vmem, size = 0x4000, scoped, tag = 'input window, operand 0']
    #allocation3 [shape = 's32[2]{0}', space=sflag, size = 0x8, scoped, tag = 'scoped memory for tpu_custom_call.1']
    #allocation4 [shape = 's32[2]{0}', space=sflag, size = 0x8, scoped, tag = 'scoped memory for tpu_custom_call.1']
    #allocation5 [shape = 'u8[65536]{0}', space=vmem, size = 0x10000, scoped, tag = 'input window, operand 1, single buffered']
    #allocation6 [shape = 's32[1]{0}', space=sflag, size = 0x4, scoped, tag = 'scoped memory for tpu_custom_call.1']
    #allocation7 [shape = 'u8[196608]{0}', space=vmem, size = 0x30000, scoped, tag = 'input window, operand 3, single buffered']
    #allocation8 [shape = 'u8[16384]{0}', space=vmem, size = 0x4000, scoped, tag = 'output window, operand 0']
    %10 = vsyncpa [#allocation3], 0
    %s11 = scalar_lea.sflag [#allocation3], 1
    %12 = vsyncpa %s11, 0
    %13 = vsyncpa [#allocation6], 0
    %14 = vsyncpa [#allocation4], 0
    %s15 = scalar_lea.sflag [#allocation4], 1
    %16 = vsyncpa %s15, 0
    loop: start=0, step=1, limit=4
    $region2: #{tpu_custom_call.1} parent=1 // loop_pre_header
      _
    $region3: #{tpu_custom_call.1} parent=1 // loop_header
      %s18 = sphi 0, %s22
      %p19 = scmp.ge.s32.totalorder %s18, 4
      %s28 = sphi 0, %s30
      %s31 = sphi 0, %s28
      %s32 = sphi 0, %s31
      %s48 = sphi 0, %s32
      %s52 = sphi 0, %s52
      %s54 = sphi 0, %s52
      %s55 = sphi 0, %s54
      %s69 = sphi 0, %s55
      %s73 = sphi 0, %s73
      %s75 = sphi 0, %s73
      %s76 = sphi 0, %s75
      %s90 = sphi 0, %s76
      %s94 = sphi 0, %s94
      %s96 = sphi 0, %s94
      %s97 = sphi 0, %s96
      %s111 = sphi 0, %s97
      %s115 = sphi 0, %s115
      %s117 = sphi 0, %s115
      %s118 = sphi 0, %s117
      %s132 = sphi 0, %s118
      %s138 = sphi 0, %s140
      %s141 = sphi 0, %s138
      %s142 = sphi 0, %s141
      %s158 = sphi 0, %s142
    $region4: #{tpu_custom_call.1} parent=1 // loop_header_branch
      %21 = sbr.rel (%p19) target = $region8
    $region5: #{tpu_custom_call.1} parent=1 // loop_body
      %s23 = ssub.s32 %s18, 1
      %s24 = ssub.s32 %s18, 2
      %s25 = sadd.s32 %s18, 1
      %s26 = ssub.s32 %s18, %s25
      %p27 = scmp.eq.s32.totalorder %s26, 0
      %s29 = sadd.s32 %s28, 1
      %s30 = scalar_select %p27, %s28, %s29
      %p33 = pneg %p27
      %p34 = scmp.eq.s32.totalorder %s18, 1
      %p35 = por %p33, %p34
      %p36 = scmp.ne.s32.totalorder %s28, %s31
      %p37 = scmp.eq.s32.totalorder %s18, 0
      %p38 = por %p36, %p37
      %p39 = scmp.ne.s32.totalorder %s28, %s31
      %p40 = scmp.eq.s32.totalorder %s23, 1
      %p41 = por %p39, %p40
      %p42 = scmp.ne.s32.totalorder %s31, %s32
      %p43 = scmp.eq.s32.totalorder %s23, 0
      %p44 = por %p42, %p43
      %p45 = scmp.ne.s32.totalorder %s31, %s32
      %p46 = scmp.eq.s32.totalorder %s24, 1
      %p47 = por %p45, %p46
      %p49 = scmp.ne.s32.totalorder %s32, %s48
      %p50 = scmp.eq.s32.totalorder %s24, 0
      %p51 = por %p49, %p50
      %s53 = sadd.s32 %s52, 1
      %p56 = scmp.eq.s32.totalorder %s18, 1
      %p57 = scmp.ne.s32.totalorder %s52, %s54
      %p58 = scmp.eq.s32.totalorder %s18, 0
      %p59 = por %p57, %p58
      %p60 = scmp.ne.s32.totalorder %s52, %s54
      %p61 = scmp.eq.s32.totalorder %s23, 1
      %p62 = por %p60, %p61
      %p63 = scmp.ne.s32.totalorder %s54, %s55
      %p64 = scmp.eq.s32.totalorder %s23, 0
      %p65 = por %p63, %p64
      %p66 = scmp.ne.s32.totalorder %s54, %s55
      %p67 = scmp.eq.s32.totalorder %s24, 1
      %p68 = por %p66, %p67
      %p70 = scmp.ne.s32.totalorder %s55, %s69
      %p71 = scmp.eq.s32.totalorder %s24, 0
      %p72 = por %p70, %p71
      %s74 = sadd.s32 %s73, 1
      %p77 = scmp.eq.s32.totalorder %s18, 1
      %p78 = scmp.ne.s32.totalorder %s73, %s75
      %p79 = scmp.eq.s32.totalorder %s18, 0
      %p80 = por %p78, %p79
      %p81 = scmp.ne.s32.totalorder %s73, %s75
      %p82 = scmp.eq.s32.totalorder %s23, 1
      %p83 = por %p81, %p82
      %p84 = scmp.ne.s32.totalorder %s75, %s76
      %p85 = scmp.eq.s32.totalorder %s23, 0
      %p86 = por %p84, %p85
      %p87 = scmp.ne.s32.totalorder %s75, %s76
      %p88 = scmp.eq.s32.totalorder %s24, 1
      %p89 = por %p87, %p88
      %p91 = scmp.ne.s32.totalorder %s76, %s90
      %p92 = scmp.eq.s32.totalorder %s24, 0
      %p93 = por %p91, %p92
      %s95 = sadd.s32 %s94, 1
      %p98 = scmp.eq.s32.totalorder %s18, 1
      %p99 = scmp.ne.s32.totalorder %s94, %s96
      %p100 = scmp.eq.s32.totalorder %s18, 0
      %p101 = por %p99, %p100
      %p102 = scmp.ne.s32.totalorder %s94, %s96
      %p103 = scmp.eq.s32.totalorder %s23, 1
      %p104 = por %p102, %p103
      %p105 = scmp.ne.s32.totalorder %s96, %s97
      %p106 = scmp.eq.s32.totalorder %s23, 0
      %p107 = por %p105, %p106
      %p108 = scmp.ne.s32.totalorder %s96, %s97
      %p109 = scmp.eq.s32.totalorder %s24, 1
      %p110 = por %p108, %p109
      %p112 = scmp.ne.s32.totalorder %s97, %s111
      %p113 = scmp.eq.s32.totalorder %s24, 0
      %p114 = por %p112, %p113
      %s116 = sadd.s32 %s115, 1
      %p119 = scmp.eq.s32.totalorder %s18, 1
      %p120 = scmp.ne.s32.totalorder %s115, %s117
      %p121 = scmp.eq.s32.totalorder %s18, 0
      %p122 = por %p120, %p121
      %p123 = scmp.ne.s32.totalorder %s115, %s117
      %p124 = scmp.eq.s32.totalorder %s23, 1
      %p125 = por %p123, %p124
      %p126 = scmp.ne.s32.totalorder %s117, %s118
      %p127 = scmp.eq.s32.totalorder %s23, 0
      %p128 = por %p126, %p127
      %p129 = scmp.ne.s32.totalorder %s117, %s118
      %p130 = scmp.eq.s32.totalorder %s24, 1
      %p131 = por %p129, %p130
      %p133 = scmp.ne.s32.totalorder %s118, %s132
      %p134 = scmp.eq.s32.totalorder %s24, 0
      %p135 = por %p133, %p134
      %s136 = ssub.s32 %s18, %s25
      %p137 = scmp.eq.s32.totalorder %s136, 0
      %s139 = sadd.s32 %s138, 1
      %s140 = scalar_select %p137, %s138, %s139
      %p143 = pneg %p137
      %p144 = scmp.eq.s32.totalorder %s18, 1
      %p145 = por %p143, %p144
      %p146 = scmp.ne.s32.totalorder %s138, %s141
      %p147 = scmp.eq.s32.totalorder %s18, 0
      %p148 = por %p146, %p147
      %p149 = scmp.ne.s32.totalorder %s138, %s141
      %p150 = scmp.eq.s32.totalorder %s23, 1
      %p151 = por %p149, %p150
      %p152 = scmp.ne.s32.totalorder %s141, %s142
      %p153 = scmp.eq.s32.totalorder %s23, 0
      %p154 = por %p152, %p153
      %p155 = scmp.ne.s32.totalorder %s141, %s142
      %p156 = scmp.eq.s32.totalorder %s24, 1
      %p157 = por %p155, %p156
      %p159 = scmp.ne.s32.totalorder %s142, %s158
      %p160 = scmp.eq.s32.totalorder %s24, 0
      %p161 = por %p159, %p160
      %p162 = scmp.le.s32.totalorder 1, %s18
      %p163 = scmp.lt.s32.totalorder %s18, 3
      %p164 = pnand %p162, %p163
      %p165 = pneg %p164
      // Predicated region
      $region9: #{tpu_custom_call.1} parent=5 // pred_check
        _
      $region10: #{tpu_custom_call.1} parent=5 // pred_check_branch
        %167 = sbr.rel (%p164) target = $region12
      $region11: #{tpu_custom_call.1} parent=5 // pred_region
        %s168 = ssub.s32 %s18, 1
        // Predicated region
        $region13: #{tpu_custom_call.1} parent=11 // pred_check
          %p169 = pneg %p65
        $region14: #{tpu_custom_call.1} parent=11 // pred_check_branch
          %171 = sbr.rel (%p169) target = $region16
        $region15: #{tpu_custom_call.1} parent=11 // pred_region
          %s173 = ssub.s32 2048, 2048
          %174 = vsyncadd [#allocation6], %s173
          %s175 = sshll.u32 [#allocation5], 4
          %s176 = int_to_ptr.vmem [resolvable:$true] %s175
          %181 = dma.hbm_to_vmem [thread:$0]  %s1, 2048, %s176, [#allocation6], 128, 128, 8
        $region16: #{tpu_custom_call.1} parent=11 // pred_fallthru
          _
        // Predicated region
        $region17: #{tpu_custom_call.1} parent=11 // pred_check
          %p182 = pneg %p86
        $region18: #{tpu_custom_call.1} parent=11 // pred_check_branch
          %184 = sbr.rel (%p182) target = $region20
        $region19: #{tpu_custom_call.1} parent=11 // pred_region
          _
        $region20: #{tpu_custom_call.1} parent=11 // pred_fallthru
          _
        // Predicated region
        $region21: #{tpu_custom_call.1} parent=11 // pred_check
          %p185 = pneg %p107
        $region22: #{tpu_custom_call.1} parent=11 // pred_check_branch
          %187 = sbr.rel (%p185) target = $region24
        $region23: #{tpu_custom_call.1} parent=11 // pred_region
          %s189 = ssub.s32 6144, 6144
          %190 = vsyncadd [#allocation6], %s189
          %s191 = sshll.u32 [#allocation7], 4
          %s192 = int_to_ptr.vmem [resolvable:$true] %s191
          %197 = dma.hbm_to_vmem [thread:$0]  %s3, 6144, %s192, [#allocation6], 128, 128, 8
        $region24: #{tpu_custom_call.1} parent=11 // pred_fallthru
          _
        // Predicated region
        $region25: #{tpu_custom_call.1} parent=11 // pred_check
          %p198 = pneg %p128
        $region26: #{tpu_custom_call.1} parent=11 // pred_check_branch
          %200 = sbr.rel (%p198) target = $region28
        $region27: #{tpu_custom_call.1} parent=11 // pred_region
          _
        $region28: #{tpu_custom_call.1} parent=11 // pred_fallthru
          _
      $region12: #{tpu_custom_call.1} parent=5 // pred_fallthru
        _
      %p201 = scmp.lt.s32.totalorder %s18, 2
      // Predicated region
      $region29: #{tpu_custom_call.1} parent=5 // pred_check
        %p202 = pneg %p201
      $region30: #{tpu_custom_call.1} parent=5 // pred_check_branch
        %204 = sbr.rel (%p202) target = $region32
      $region31: #{tpu_custom_call.1} parent=5 // pred_region
        // Predicated region
        $region33: #{tpu_custom_call.1} parent=31 // pred_check
          %p205 = pneg %p38
        $region34: #{tpu_custom_call.1} parent=31 // pred_check_branch
          %207 = sbr.rel (%p205) target = $region36
        $region35: #{tpu_custom_call.1} parent=31 // pred_region
          %s208 = sand.u32 %s28, 1
          %s209 = scalar_lea.sflag [#allocation3], %s208
          %s210 = sand.u32 %s28, 1
          %s211 = smul.addr %s210, 16
          %s212 = scalar_lea.vmem [#allocation2], %s211
          %s214 = ssub.s32 256, 256
          %215 = vsyncadd %s209, %s214
          %s216 = smul.addr %s18, 2
          %s217 = smul.addr %s216, 128
          %s218 = scalar_lea.hbm %s0, %s217
          %s219 = sshll.u32 %s212, 4
          %s220 = int_to_ptr.vmem [resolvable:$true] %s219
          %225 = dma.hbm_to_vmem [thread:$0]  %s218, 256, %s220, %s209, 128, 128, 8
        $region36: #{tpu_custom_call.1} parent=31 // pred_fallthru
          _
      $region32: #{tpu_custom_call.1} parent=5 // pred_fallthru
        _
      %p226 = scmp.le.s32.totalorder 1, %s18
      %p227 = scmp.lt.s32.totalorder %s18, 3
      %p228 = pnand %p226, %p227
      %p229 = pneg %p228
      // Predicated region
      $region37: #{tpu_custom_call.1} parent=5 // pred_check
        _
      $region38: #{tpu_custom_call.1} parent=5 // pred_check_branch
        %231 = sbr.rel (%p228) target = $region40
      $region39: #{tpu_custom_call.1} parent=5 // pred_region
        %s232 = ssub.s32 %s18, 1
        %s233 = sand.u32 %s31, 1
        %s234 = scalar_lea.sflag [#allocation3], %s233
        %s235 = sand.u32 %s31, 1
        %s236 = smul.addr %s235, 16
        %s237 = scalar_lea.vmem [#allocation2], %s236
        // Predicated region
        $region41: #{tpu_custom_call.1} parent=39 // pred_check
          %p238 = pneg %p44
        $region42: #{tpu_custom_call.1} parent=39 // pred_check_branch
          %240 = sbr.rel (%p238) target = $region44
        $region43: #{tpu_custom_call.1} parent=39 // pred_region
          %241 = dma.done %s234, 256
        $region44: #{tpu_custom_call.1} parent=39 // pred_fallthru
          _
        // Predicated region
        $region45: #{tpu_custom_call.1} parent=39 // pred_check
          %p242 = pneg %p65
        $region46: #{tpu_custom_call.1} parent=39 // pred_check_branch
          %244 = sbr.rel (%p242) target = $region48
        $region47: #{tpu_custom_call.1} parent=39 // pred_region
          %245 = dma.done [#allocation6], 2048
        $region48: #{tpu_custom_call.1} parent=39 // pred_fallthru
          _
        // Predicated region
        $region49: #{tpu_custom_call.1} parent=39 // pred_check
          %p246 = pneg %p107
        $region50: #{tpu_custom_call.1} parent=39 // pred_check_branch
          %248 = sbr.rel (%p246) target = $region52
        $region51: #{tpu_custom_call.1} parent=39 // pred_region
          %249 = dma.done [#allocation6], 6144
        $region52: #{tpu_custom_call.1} parent=39 // pred_fallthru
          _
        %s250 = sand.u32 %s31, 1
        %s251 = scalar_lea.sflag [#allocation3], %s250
        %s252 = sand.u32 %s31, 1
        %s253 = smul.addr %s252, 16
        %s254 = scalar_lea.vmem [#allocation2], %s253
        %p255 = pneg %p44
        %p256 = pneg %p41
        %p257 = pneg %p65
        %p258 = pneg %p62
        %p259 = pneg %p86
        %p260 = pneg %p83
        %p261 = pneg %p107
        %p262 = pneg %p104
        %p263 = pneg %p128
        %p264 = pneg %p125
        %p265 = pneg %p154
        %p266 = pneg %p151
        %s267 = sand.u32 %s141, 1
        %s268 = scalar_lea.sflag [#allocation4], %s267
        %s269 = sand.u32 %s141, 1
        %s270 = smul.addr %s269, 16
        %s271 = scalar_lea.vmem [#allocation8], %s270
        %v272 = vld [vmem:[%s237] sm:$0xff]
        %v273 = vld [vmem:[%s237 + $0x8] sm:$0xff]
        %v274 = vld [vmem:[#allocation5] sm:$0xff]
        %v275 = vld [vmem:[#allocation5 + $0x8] sm:$0xff]
        %v276 = vld [vmem:[#allocation5 + $0x10] sm:$0xff]
        %v277 = vld [vmem:[#allocation5 + $0x18] sm:$0xff]
        %v278 = vld [vmem:[#allocation5 + $0x20] sm:$0xff]
        %v279 = vld [vmem:[#allocation5 + $0x28] sm:$0xff]
        %v280 = vld [vmem:[#allocation5 + $0x30] sm:$0xff]
        %v281 = vld [vmem:[#allocation5 + $0x38] sm:$0xff]
        %v282 = vld [vmem:[#allocation5 + $0x40] sm:$0xff]
        %v283 = vld [vmem:[#allocation5 + $0x48] sm:$0xff]
        %v284 = vld [vmem:[#allocation5 + $0x50] sm:$0xff]
        %v285 = vld [vmem:[#allocation5 + $0x58] sm:$0xff]
        %v286 = vld [vmem:[#allocation5 + $0x60] sm:$0xff]
        %v287 = vld [vmem:[#allocation5 + $0x68] sm:$0xff]
        %v288 = vld [vmem:[#allocation5 + $0x70] sm:$0xff]
        %v289 = vld [vmem:[#allocation5 + $0x78] sm:$0xff]
        %v290 = vld [vmem:[%s2] sm:$0x1]
        %v292 = vlaneseq
        %v293 = vshrl.u32 %v292, 7
        %v294 = vsub.s32 0, %v293
        %v295 = vrot.slane %v290, %v294
        %297 = vmatprep.subr.mxu0 0.0
        %298 = vmatpush1.msra.mxu0 %v289
        %299 = vmatprep.subr.mxu0 0.0
        %300 = vmatpush1.msra.mxu0 %v288
        %301 = vmatprep.subr.mxu0 0.0
        %302 = vmatpush1.msra.mxu0 %v287
        %303 = vmatprep.subr.mxu0 0.0
        %304 = vmatpush1.msra.mxu0 %v286
        %305 = vmatprep.subr.mxu0 0.0
        %306 = vmatpush1.msra.mxu0 %v285
        %307 = vmatprep.subr.mxu0 0.0
        %308 = vmatpush1.msra.mxu0 %v284
        %309 = vmatprep.subr.mxu0 0.0
        %310 = vmatpush1.msra.mxu0 %v283
        %311 = vmatprep.subr.mxu0 0.0
        %312 = vmatpush1.msra.mxu0 %v282
        %313 = vmatprep.subr.mxu0 0.0
        %314 = vmatpush1.msra.mxu0 %v281
        %315 = vmatprep.subr.mxu0 0.0
        %316 = vmatpush1.msra.mxu0 %v280
        %317 = vmatprep.subr.mxu0 0.0
        %318 = vmatpush1.msra.mxu0 %v279
        %319 = vmatprep.subr.mxu0 0.0
        %320 = vmatpush1.msra.mxu0 %v278
        %321 = vmatprep.subr.mxu0 0.0
        %322 = vmatpush1.msra.mxu0 %v277
        %323 = vmatprep.subr.mxu0 0.0
        %324 = vmatpush1.msra.mxu0 %v276
        %325 = vmatprep.subr.mxu0 0.0
        %326 = vmatpush1.msra.mxu0 %v275
        %327 = vmatprep.subr.mxu0 0.0
        %328 = vmatpush1.msra.mxu0 %v274
        %329 = vmatprep.subr.mxu0 0.0
        %330 = vmatpush2.msra.mxu0 0.0
        %331 = vmatprep.subr.mxu0 0.0
        %332 = vmatpush2.msra.mxu0 0.0
        %333 = vmatprep.subr.mxu0 0.0
        %334 = vmatpush2.msra.mxu0 0.0
        %335 = vmatprep.subr.mxu0 0.0
        %336 = vmatpush2.msra.mxu0 0.0
        %337 = vmatprep.subr.mxu0 0.0
        %338 = vmatpush2.msra.mxu0 0.0
        %339 = vmatprep.subr.mxu0 0.0
        %340 = vmatpush2.msra.mxu0 0.0
        %341 = vmatprep.subr.mxu0 0.0
        %342 = vmatpush2.msra.mxu0 0.0
        %343 = vmatprep.subr.mxu0 0.0
        %344 = vmatpush2.msra.mxu0 0.0
        %345 = vmatprep.subr.mxu0 0.0
        %346 = vmatpush2.msra.mxu0 0.0
        %347 = vmatprep.subr.mxu0 0.0
        %348 = vmatpush2.msra.mxu0 0.0
        %349 = vmatprep.subr.mxu0 0.0
        %350 = vmatpush2.msra.mxu0 0.0
        %351 = vmatprep.subr.mxu0 0.0
        %352 = vmatpush2.msra.mxu0 0.0
        %353 = vmatprep.subr.mxu0 0.0
        %354 = vmatpush2.msra.mxu0 0.0
        %355 = vmatprep.subr.mxu0 0.0
        %356 = vmatpush2.msra.mxu0 0.0
        %357 = vmatprep.subr.mxu0 0.0
        %358 = vmatpush2.msra.mxu0 0.0
        %359 = vmatprep.subr.mxu0 0.0
        %360 = vmatpush2.msra.mxu0 0.0
        %361 = vmatprep.mubr.f32.mxu0 0.0
        %362 = vmatmul.mubr.f32.gmra.mxu0 %v272
        %v363 = vpop.f32.mrf.mxu0
        %v364 = vadd.f32 %v295, %v363
        %v365 = vpop.f32.mrf.mxu0
        %366 = vmatprep.mubr.f32.mxu0 0.0
        %367 = vmatmul.mubr.f32.gmra.mxu0 %v273
        %v368 = vpop.f32.mrf.mxu0
        %v369 = vadd.f32 %v295, %v368
        %v370 = vpop.f32.mrf.mxu0
        %371 = vdwg.mxu0
        %v372 = vmin.f32 %v364, 20.0
        %v373 = vmin.f32 %v369, 20.0
        %v374 = vmul.f32 %v372, 1.442695
        %v375 = vpow.pop %v374
        %v376 = vmul.f32 %v373, 1.442695
        %v377 = vpow.pop %v376
        %v378 = vadd.f32 %v375, 2.0
        %v379 = vadd.f32 %v377, 2.0
        %v380 = vmul.f32 %v375, %v378
        %v381 = vmul.f32 %v377, %v379
        %vm382 = vcmp.gt.f32.partialorder %v364, 20.0
        %vm383 = vcmp.gt.f32.partialorder %v369, 20.0
        %v384 = vadd.f32 %v380, 2.0
        %v385 = vadd.f32 %v381, 2.0
        %v386 = vrcp.pop %v384
        %v387 = vmul.f32 %v380, %v386
        %v388 = vrcp.pop %v385
        %v389 = vmul.f32 %v381, %v388
        %v390 = vmul.f32 %v364, %v387
        %v391 = vmul.f32 %v369, %v389
        %v392 = vsel %vm382, %v364, %v390
        %v393 = vsel %vm383, %v369, %v391
        %vm396 = vcmask 1040384
        %v397 = vrot.slane %v392, 7
        %v398 = vrot.slane %v393, 7
        %v399 = vsel %vm396, %v397, %v398
        %v403 = vsel %vm396, 0.0, %v397
        %v404 = vsel %vm396, %v398, 0.0
        %vm407 = vcmask 1045504
        %v408 = vrot.slane %v403, 2
        %v409 = vrot.slane %v399, 2
        %v410 = vsel %vm407, %v408, %v409
        %v411 = vrot.slane %v404, 2
        %v412 = vsel %vm407, %v409, %v411
        %v415 = vld [vmem:[#allocation7] sm:$0xff]
        %v416 = vld [vmem:[#allocation7 + $0x8] sm:$0xff]
        %v417 = vld [vmem:[#allocation7 + $0x10] sm:$0xff]
        %v418 = vld [vmem:[#allocation7 + $0x18] sm:$0xff]
        %v419 = vld [vmem:[#allocation7 + $0x20] sm:$0xff]
        %v420 = vld [vmem:[#allocation7 + $0x28] sm:$0xff]
        %v421 = vld [vmem:[#allocation7 + $0x30] sm:$0xff]
        %v422 = vld [vmem:[#allocation7 + $0x38] sm:$0xff]
        %v423 = vld [vmem:[#allocation7 + $0x40] sm:$0xff]
        %v424 = vld [vmem:[#allocation7 + $0x48] sm:$0xff]
        %v425 = vld [vmem:[#allocation7 + $0x50] sm:$0xff]
        %v426 = vld [vmem:[#allocation7 + $0x58] sm:$0xff]
        %v427 = vld [vmem:[#allocation7 + $0x60] sm:$0xff]
        %v428 = vld [vmem:[#allocation7 + $0x68] sm:$0xff]
        %v429 = vld [vmem:[#allocation7 + $0x70] sm:$0xff]
        %v430 = vld [vmem:[#allocation7 + $0x78] sm:$0xff]
        %v431 = vld [vmem:[#allocation7 + $0x80] sm:$0xff]
        %v432 = vld [vmem:[#allocation7 + $0x88] sm:$0xff]
        %v433 = vld [vmem:[#allocation7 + $0x90] sm:$0xff]
        %v434 = vld [vmem:[#allocation7 + $0x98] sm:$0xff]
        %v435 = vld [vmem:[#allocation7 + $0xa0] sm:$0xff]
        %v436 = vld [vmem:[#allocation7 + $0xa8] sm:$0xff]
        %v437 = vld [vmem:[#allocation7 + $0xb0] sm:$0xff]
        %v438 = vld [vmem:[#allocation7 + $0xb8] sm:$0xff]
        %v439 = vld [vmem:[#allocation7 + $0xc0] sm:$0xff]
        %v440 = vld [vmem:[#allocation7 + $0xc8] sm:$0xff]
        %v441 = vld [vmem:[#allocation7 + $0xd0] sm:$0xff]
        %v442 = vld [vmem:[#allocation7 + $0xd8] sm:$0xff]
        %v443 = vld [vmem:[#allocation7 + $0xe0] sm:$0xff]
        %v444 = vld [vmem:[#allocation7 + $0xe8] sm:$0xff]
        %v445 = vld [vmem:[#allocation7 + $0xf0] sm:$0xff]
        %v446 = vld [vmem:[#allocation7 + $0xf8] sm:$0xff]
        %v447 = vld [vmem:[#allocation7 + $0x100] sm:$0xff]
        %v448 = vld [vmem:[#allocation7 + $0x108] sm:$0xff]
        %v449 = vld [vmem:[#allocation7 + $0x110] sm:$0xff]
        %v450 = vld [vmem:[#allocation7 + $0x118] sm:$0xff]
        %v451 = vld [vmem:[#allocation7 + $0x120] sm:$0xff]
        %v452 = vld [vmem:[#allocation7 + $0x128] sm:$0xff]
        %v453 = vld [vmem:[#allocation7 + $0x130] sm:$0xff]
        %v454 = vld [vmem:[#allocation7 + $0x138] sm:$0xff]
        %v455 = vld [vmem:[#allocation7 + $0x140] sm:$0xff]
        %v456 = vld [vmem:[#allocation7 + $0x148] sm:$0xff]
        %v457 = vld [vmem:[#allocation7 + $0x150] sm:$0xff]
        %v458 = vld [vmem:[#allocation7 + $0x158] sm:$0xff]
        %v459 = vld [vmem:[#allocation7 + $0x160] sm:$0xff]
        %v460 = vld [vmem:[#allocation7 + $0x168] sm:$0xff]
        %v461 = vld [vmem:[#allocation7 + $0x170] sm:$0xff]
        %v462 = vld [vmem:[#allocation7 + $0x178] sm:$0xff]
        %v463 = vld [vmem:[%s4] sm:$0x1]
        %v465 = vlaneseq
        %v466 = vshrl.u32 %v465, 7
        %v467 = vsub.s32 0, %v466
        %v468 = vrot.slane %v463, %v467
        %470 = vmatprep.subr.mxu0 0.0
        %471 = vmatpush1.msra.mxu0 %v430
        %472 = vmatprep.subr.mxu0 0.0
        %473 = vmatpush1.msra.mxu0 %v429
        %474 = vmatprep.subr.mxu0 0.0
        %475 = vmatpush1.msra.mxu0 %v428
        %476 = vmatprep.subr.mxu0 0.0
        %477 = vmatpush1.msra.mxu0 %v427
        %478 = vmatprep.subr.mxu0 0.0
        %479 = vmatpush1.msra.mxu0 %v426
        %480 = vmatprep.subr.mxu0 0.0
        %481 = vmatpush1.msra.mxu0 %v425
        %482 = vmatprep.subr.mxu0 0.0
        %483 = vmatpush1.msra.mxu0 %v424
        %484 = vmatprep.subr.mxu0 0.0
        %485 = vmatpush1.msra.mxu0 %v423
        %486 = vmatprep.subr.mxu0 0.0
        %487 = vmatpush1.msra.mxu0 %v422
        %488 = vmatprep.subr.mxu0 0.0
        %489 = vmatpush1.msra.mxu0 %v421
        %490 = vmatprep.subr.mxu0 0.0
        %491 = vmatpush1.msra.mxu0 %v420
        %492 = vmatprep.subr.mxu0 0.0
        %493 = vmatpush1.msra.mxu0 %v419
        %494 = vmatprep.subr.mxu0 0.0
        %495 = vmatpush1.msra.mxu0 %v418
        %496 = vmatprep.subr.mxu0 0.0
        %497 = vmatpush1.msra.mxu0 %v417
        %498 = vmatprep.subr.mxu0 0.0
        %499 = vmatpush1.msra.mxu0 %v416
        %500 = vmatprep.subr.mxu0 0.0
        %501 = vmatpush1.msra.mxu0 %v415
        %502 = vmatprep.subr.mxu0 0.0
        %503 = vmatpush2.msra.mxu0 %v446
        %504 = vmatprep.subr.mxu0 0.0
        %505 = vmatpush2.msra.mxu0 %v445
        %506 = vmatprep.subr.mxu0 0.0
        %507 = vmatpush2.msra.mxu0 %v444
        %508 = vmatprep.subr.mxu0 0.0
        %509 = vmatpush2.msra.mxu0 %v443
        %510 = vmatprep.subr.mxu0 0.0
        %511 = vmatpush2.msra.mxu0 %v442
        %512 = vmatprep.subr.mxu0 0.0
        %513 = vmatpush2.msra.mxu0 %v441
        %514 = vmatprep.subr.mxu0 0.0
        %515 = vmatpush2.msra.mxu0 %v440
        %516 = vmatprep.subr.mxu0 0.0
        %517 = vmatpush2.msra.mxu0 %v439
        %518 = vmatprep.subr.mxu0 0.0
        %519 = vmatpush2.msra.mxu0 %v438
        %520 = vmatprep.subr.mxu0 0.0
        %521 = vmatpush2.msra.mxu0 %v437
        %522 = vmatprep.subr.mxu0 0.0
        %523 = vmatpush2.msra.mxu0 %v436
        %524 = vmatprep.subr.mxu0 0.0
        %525 = vmatpush2.msra.mxu0 %v435
        %526 = vmatprep.subr.mxu0 0.0
        %527 = vmatpush2.msra.mxu0 %v434
        %528 = vmatprep.subr.mxu0 0.0
        %529 = vmatpush2.msra.mxu0 %v433
        %530 = vmatprep.subr.mxu0 0.0
        %531 = vmatpush2.msra.mxu0 %v432
        %532 = vmatprep.subr.mxu0 0.0
        %533 = vmatpush2.msra.mxu0 %v431
        %534 = vmatprep.mubr.f32.mxu0 %v392
        %535 = vmatmul.mubr.f32.gmra.mxu0 %v403
        %v536 = vpop.f32.mrf.mxu0
        %v537 = vadd.f32 %v468, %v536
        %v538 = vpop.f32.mrf.mxu0
        %539 = vmatprep.mubr.f32.mxu0 %v393
        %540 = vmatmul.mubr.f32.gmra.mxu0 %v399
        %v541 = vpop.f32.mrf.mxu0
        %v542 = vadd.f32 %v468, %v541
        %v543 = vpop.f32.mrf.mxu0
        %544 = vdwg.mxu0
        %545 = vmatprep.subr.mxu0 0.0
        %546 = vmatpush1.msra.mxu0 %v462
        %547 = vmatprep.subr.mxu0 0.0
        %548 = vmatpush1.msra.mxu0 %v461
        %549 = vmatprep.subr.mxu0 0.0
        %550 = vmatpush1.msra.mxu0 %v460
        %551 = vmatprep.subr.mxu0 0.0
        %552 = vmatpush1.msra.mxu0 %v459
        %553 = vmatprep.subr.mxu0 0.0
        %554 = vmatpush1.msra.mxu0 %v458
        %555 = vmatprep.subr.mxu0 0.0
        %556 = vmatpush1.msra.mxu0 %v457
        %557 = vmatprep.subr.mxu0 0.0
        %558 = vmatpush1.msra.mxu0 %v456
        %559 = vmatprep.subr.mxu0 0.0
        %560 = vmatpush1.msra.mxu0 %v455
        %561 = vmatprep.subr.mxu0 0.0
        %562 = vmatpush1.msra.mxu0 %v454
        %563 = vmatprep.subr.mxu0 0.0
        %564 = vmatpush1.msra.mxu0 %v453
        %565 = vmatprep.subr.mxu0 0.0
        %566 = vmatpush1.msra.mxu0 %v452
        %567 = vmatprep.subr.mxu0 0.0
        %568 = vmatpush1.msra.mxu0 %v451
        %569 = vmatprep.subr.mxu0 0.0
        %570 = vmatpush1.msra.mxu0 %v450
        %571 = vmatprep.subr.mxu0 0.0
        %572 = vmatpush1.msra.mxu0 %v449
        %573 = vmatprep.subr.mxu0 0.0
        %574 = vmatpush1.msra.mxu0 %v448
        %575 = vmatprep.subr.mxu0 0.0
        %576 = vmatpush1.msra.mxu0 %v447
        %577 = vmatprep.subr.mxu0 0.0
        %578 = vmatpush2.msra.mxu0 0.0
        %579 = vmatprep.subr.mxu0 0.0
        %580 = vmatpush2.msra.mxu0 0.0
        %581 = vmatprep.subr.mxu0 0.0
        %582 = vmatpush2.msra.mxu0 0.0
        %583 = vmatprep.subr.mxu0 0.0
        %584 = vmatpush2.msra.mxu0 0.0
        %585 = vmatprep.subr.mxu0 0.0
        %586 = vmatpush2.msra.mxu0 0.0
        %587 = vmatprep.subr.mxu0 0.0
        %588 = vmatpush2.msra.mxu0 0.0
        %589 = vmatprep.subr.mxu0 0.0
        %590 = vmatpush2.msra.mxu0 0.0
        %591 = vmatprep.subr.mxu0 0.0
        %592 = vmatpush2.msra.mxu0 0.0
        %593 = vmatprep.subr.mxu0 0.0
        %594 = vmatpush2.msra.mxu0 0.0
        %595 = vmatprep.subr.mxu0 0.0
        %596 = vmatpush2.msra.mxu0 0.0
        %597 = vmatprep.subr.mxu0 0.0
        %598 = vmatpush2.msra.mxu0 0.0
        %599 = vmatprep.subr.mxu0 0.0
        %600 = vmatpush2.msra.mxu0 0.0
        %601 = vmatprep.subr.mxu0 0.0
        %602 = vmatpush2.msra.mxu0 0.0
        %603 = vmatprep.subr.mxu0 0.0
        %604 = vmatpush2.msra.mxu0 0.0
        %605 = vmatprep.subr.mxu0 0.0
        %606 = vmatpush2.msra.mxu0 0.0
        %607 = vmatprep.subr.mxu0 0.0
        %608 = vmatpush2.msra.mxu0 0.0
        %609 = vmatprep.mubr.f32.mxu0 0.0
        %610 = vmatmul.mubr.f32.gmra.mxu0 %v410
        %v611 = vpop.f32.mrf.mxu0
        %v612 = vadd.f32 %v537, %v611
        %v613 = vpop.f32.mrf.mxu0
        %614 = vmatprep.mubr.f32.mxu0 0.0
        %615 = vmatmul.mubr.f32.gmra.mxu0 %v412
        %v616 = vpop.f32.mrf.mxu0
        %v617 = vadd.f32 %v542, %v616
        %v618 = vpop.f32.mrf.mxu0
        %619 = vdwg.mxu0
        %v620 = vmin.f32 %v612, 20.0
        %v621 = vmin.f32 %v617, 20.0
        %v622 = vmul.f32 %v620, 1.442695
        %v623 = vpow.pop %v622
        %v624 = vmul.f32 %v621, 1.442695
        %v625 = vpow.pop %v624
        %v626 = vadd.f32 %v623, 2.0
        %v627 = vadd.f32 %v625, 2.0
        %v628 = vmul.f32 %v623, %v626
        %v629 = vmul.f32 %v625, %v627
        %vm630 = vcmp.gt.f32.partialorder %v612, 20.0
        %vm631 = vcmp.gt.f32.partialorder %v617, 20.0
        %v632 = vadd.f32 %v628, 2.0
        %v633 = vadd.f32 %v629, 2.0
        %v634 = vrcp.pop %v632
        %v635 = vmul.f32 %v628, %v634
        %v636 = vrcp.pop %v633
        %v637 = vmul.f32 %v629, %v636
        %v638 = vmul.f32 %v612, %v635
        %v639 = vmul.f32 %v617, %v637
        %v640 = vsel %vm630, %v612, %v638
        %v641 = vsel %vm631, %v617, %v639
        %v642 = vadd.f32 %v272, %v640
        %v643 = vadd.f32 %v273, %v641
        %644 = vst [vmem:[%s271] sm:$0xff] %v642
        %645 = vst [vmem:[%s271 + $0x8] sm:$0xff] %v643
        %s646 = sand.u32 %s141, 1
        %s647 = scalar_lea.sflag [#allocation4], %s646
        %s648 = sand.u32 %s141, 1
        %s649 = smul.addr %s648, 16
        %s650 = scalar_lea.vmem [#allocation8], %s649
        // Predicated region
        $region53: #{tpu_custom_call.1} parent=39 // pred_check
          %p651 = pneg %p151
        $region54: #{tpu_custom_call.1} parent=39 // pred_check_branch
          %653 = sbr.rel (%p651) target = $region56
        $region55: #{tpu_custom_call.1} parent=39 // pred_region
          %s655 = ssub.s32 256, 256
          %656 = vsyncadd %s647, %s655
          %s657 = smul.addr %s23, 2
          %s658 = smul.addr %s657, 128
          %s659 = scalar_lea.hbm %s5, %s658
          %s660 = sshll.u32 %s650, 4
          %s661 = int_to_ptr.vmem [resolvable:$true] %s660
          %666 = dma.vmem_to_hbm [thread:$0]  %s661, 256, %s659, %s647, 128, 128, 8
        $region56: #{tpu_custom_call.1} parent=39 // pred_fallthru
          _
      $region40: #{tpu_custom_call.1} parent=5 // pred_fallthru
        _
      %p667 = scmp.le.s32.totalorder 2, %s18
      // Predicated region
      $region57: #{tpu_custom_call.1} parent=5 // pred_check
        %p668 = pneg %p667
      $region58: #{tpu_custom_call.1} parent=5 // pred_check_branch
        %670 = sbr.rel (%p668) target = $region60
      $region59: #{tpu_custom_call.1} parent=5 // pred_region
        %s671 = ssub.s32 %s18, 2
        // Predicated region
        $region61: #{tpu_custom_call.1} parent=59 // pred_check
          %p672 = pneg %p157
        $region62: #{tpu_custom_call.1} parent=59 // pred_check_branch
          %674 = sbr.rel (%p672) target = $region64
        $region63: #{tpu_custom_call.1} parent=59 // pred_region
          %s675 = sand.u32 %s142, 1
          %s676 = scalar_lea.sflag [#allocation4], %s675
          %s677 = sand.u32 %s142, 1
          %s678 = smul.addr %s677, 16
          %s679 = scalar_lea.vmem [#allocation8], %s678
          %680 = dma.done %s676, 256
        $region64: #{tpu_custom_call.1} parent=59 // pred_fallthru
          _
      $region60: #{tpu_custom_call.1} parent=5 // pred_fallthru
        _
    $region6: #{tpu_custom_call.1} parent=1 // loop_footer
      %s22 = sadd.s32 1, %s18
    $region7: #{tpu_custom_call.1} parent=1 // loop_footer_branch
      %17 = sbr.rel target = $region3
    $region8: #{tpu_custom_call.1} parent=1 // loop_exit
      _
    %681 = vsyncpa [#allocation3], 1
    %s682 = scalar_lea.sflag [#allocation3], 1
    %683 = vsyncpa %s682, 1
    %684 = vsyncpa [#allocation6], 1
    %685 = vsyncpa [#allocation4], 1
    %s686 = scalar_lea.sflag [#allocation4], 1
    %687 = vsyncpa %s686, 1

</llo_original>
